<compile_context>
chip_gen: v7x
topology: tpu7x:2x2x1
jax: 0.10.0
libtpu: 0.0.40
codegen_flags: <defaults>
</compile_context>

<pallas_src>
import functools

import jax
import jax.numpy as jnp
from jax import lax
from jax.experimental import pallas as pl
from jax.experimental.pallas import tpu as pltpu


# --------------------------------------------------------------------------- kernel ----

def _conv3x3_taps(act, w_ref, b_ref, *, Wp, L, np_roll):
    """3x3 'same' conv on a padded-flattened activation.

    act   : (Cin, L) value; border / dead lanes are zero (they ARE the conv zero padding).
    w_ref : (9, Cout, Cin) VMEM ref, tap-major (k = ky*3 + kx), transpose-conv-flipped.
    b_ref : (Cout, 1) VMEM ref.
    Returns (Cout, L); non-interior lanes hold garbage and are masked by the caller.
    """
    acc = None
    for k in range(9):
        ky, kx = divmod(k, 3)
        off = (ky - 1) * Wp + (kx - 1)                  # lane offset of this tap
        if off == 0:
            tap = act
        else:
            shift = ((-off) if np_roll else off) % L    # want tap[p] == act[p + off]
            tap = pltpu.roll(act, shift, axis=1)        # XLU lane rotation, stays in vregs
        d = jnp.dot(w_ref[k], tap, preferred_element_type=jnp.float32)
        acc = d if acc is None else acc + d
    return acc + b_ref[...]


def _refine_kernel(x_ref, mask_ref, w1_ref, b1_ref, w2_ref, b2_ref, w3_ref, b3_ref,
                   out_ref, *, Wp, np_roll):
    # x_ref   : (B, 36, L)   layer-1 tap slab (built in the wrapper), padded-flattened lanes
    # mask_ref: (1, L)       1.0 on interior pixels, 0.0 on the border ring / dead lanes
    # w1_ref  : (64, 36)     (Cout, 9*Cin) flipped transpose-conv weights, tap-major columns
    # w2_ref  : (9, 32, 64)  per-tap (Cout, Cin) weights
    # w3_ref  : (9, 8, 32)   Cout zero-padded 3 -> 8 (one sublane tile)
    # b*_ref  : (Cout, 1)
    # out_ref : (B, 8, L)    lane/sublane-dense output; wrapper keeps rows 0..2, interior lanes
    B = x_ref.shape[0]
    L = x_ref.shape[2]
    mask = mask_ref[...]
    w1 = w1_ref[...]
    b1 = b1_ref[...]
    for b in range(B):                                   # trace-time unrolled, B is small
        # Layer 1: one matmul over the pre-built 36-row tap slab, ReLU, re-zero padding ring.
        a1 = jnp.dot(w1, x_ref[b], preferred_element_type=jnp.float32) + b1
        a1 = jnp.maximum(a1, 0.0) * mask                                       # (64, L)
        # Layer 2: 9 lane-rolled taps -> 9 accumulated MXU dots.
        a2 = _conv3x3_taps(a1, w2_ref, b2_ref, Wp=Wp, L=L, np_roll=np_roll)
        a2 = jnp.maximum(a2, 0.0) * mask                                       # (32, L)
        # Layer 3: same, then sigmoid (no mask needed -- wrapper discards non-interior lanes).
        z3 = _conv3x3_taps(a2, w3_ref, b3_ref, Wp=Wp, L=L, np_roll=np_roll)    # (8, L)
        out_ref[b] = jax.nn.sigmoid(z3)


# ------------------------------------------------------------------ wrapper helpers ----

def _flip_tconv_weight(w_t):
    """ConvTranspose2d weight (Cin, Cout, 3, 3) -> w[ky, kx, co, ci] = w_t[ci, co, 2-ky, 2-kx].

    (stride-1, pad-1 transposed conv == 'same' cross-correlation with the spatially flipped
    kernel and swapped channel axes.)"""
    return jnp.transpose(w_t, (2, 3, 1, 0))[::-1, ::-1]


def _build_layer1_slab(x_nhwc, L):
    """(N, H, W, C0) -> (N, 9*C0, L): 9-tap slab of the input in the kernel's
    padded-flattened, channels-on-sublanes / pixels-on-lanes layout (rows k*C0 + ci)."""
    N, H, W, C0 = x_nhwc.shape
    Hp, Wp = H + 2, W + 2
    x = jnp.transpose(x_nhwc, (0, 3, 1, 2))                       # (N, C0, H, W)
    xp = jnp.pad(x, ((0, 0), (0, 0), (2, 2), (2, 2)))             # pad 2: covers border-ring taps
    taps = [xp[:, :, ky:ky + Hp, kx:kx + Wp] for ky in range(3) for kx in range(3)]
    slab = jnp.stack(taps, axis=1).reshape(N, 9 * C0, Hp * Wp)
    return jnp.pad(slab, ((0, 0), (0, 0), (0, L - Hp * Wp)))


def _interior_mask(H, W, L):
    Hp, Wp = H + 2, W + 2
    m = jnp.zeros((Hp, Wp), jnp.float32).at[1:H + 1, 1:W + 1].set(1.0)
    return jnp.pad(m.reshape(1, Hp * Wp), ((0, 0), (0, L - Hp * Wp)))


_ROLL_IS_NP_STYLE = None


def _roll_is_np_style():
    """One-time on-device probe of pltpu.roll's rotation direction.

    np.roll convention: out[i] = x[(i - shift) % n] (element 0 lands at index `shift`)."""
    global _ROLL_IS_NP_STYLE
    if _ROLL_IS_NP_STYLE is None:
        def probe(x_ref, o_ref):
            o_ref[...] = pltpu.roll(x_ref[...], 1, axis=1)
        x = jnp.broadcast_to(jnp.arange(128, dtype=jnp.float32), (8, 128))
        y = pl.pallas_call(probe, out_shape=jax.ShapeDtypeStruct((8, 128), jnp.float32))(x)
        _ROLL_IS_NP_STYLE = bool(float(y[0, 0]) == 127.0)
    return _ROLL_IS_NP_STYLE


@functools.lru_cache(maxsize=None)
def _build_forward(images_per_step, np_roll):
    B = images_per_step

    @jax.jit
    def forward(input_patch, params):
        (w1, b1), (w2, b2), (w3, b3) = params
        N, H, W, C0 = input_patch.shape
        Hp, Wp = H + 2, W + 2
        L = ((Hp * Wp + 127) // 128) * 128           # lane length: padded grid, 128-aligned

        # Transpose-conv -> flipped-conv weights, arranged for the kernel layouts (free).
        wf1 = _flip_tconv_weight(w1)                                   # (3,3,64,4)
        wf2 = _flip_tconv_weight(w2)                                   # (3,3,32,64)
        wf3 = _flip_tconv_weight(w3)                                   # (3,3,3,32)
        C1, C2, C3 = wf1.shape[2], wf2.shape[2], wf3.shape[2]
        C3p = 8                                                        # pad tiny Cout to a sublane tile
        w1e = jnp.transpose(wf1, (2, 0, 1, 3)).reshape(C1, 9 * C0)     # (64, 36), cols k*C0+ci
        w2s = wf2.reshape(9, C2, C1)                                   # (9, 32, 64)
        w3s = jnp.pad(wf3.reshape(9, C3, C2), ((0, 0), (0, C3p - C3), (0, 0)))   # (9, 8, 32)
        b1r = b1.reshape(C1, 1)
        b2r = b2.reshape(C2, 1)
        b3r = jnp.pad(b3.reshape(C3, 1), ((0, C3p - C3), (0, 0)))

        x_slab = _build_layer1_slab(input_patch.astype(jnp.float32), L)   # (N, 36, L)
        mask = _interior_mask(H, W, L)                                    # (1, L)

        G = -(-N // B)                       # ceil(N / B) grid steps
        Np = G * B
        if Np != N:
            x_slab = jnp.pad(x_slab, ((0, Np - N), (0, 0), (0, 0)))

        def full_spec(arr):
            ndim = arr.ndim
            return pl.BlockSpec(arr.shape, lambda g: (0,) * ndim)

        kernel = functools.partial(_refine_kernel, Wp=Wp, np_roll=np_roll)
        out = pl.pallas_call(
            kernel,
            out_shape=jax.ShapeDtypeStruct((Np, C3p, L), jnp.float32),
            grid_spec=pltpu.PrefetchScalarGridSpec(
                num_scalar_prefetch=0,
                grid=(G,),
                in_specs=[
                    pl.BlockSpec((B, 9 * C0, L), lambda g: (g, 0, 0)),
                    full_spec(mask),
                    full_spec(w1e), full_spec(b1r),
                    full_spec(w2s), full_spec(b2r),
                    full_spec(w3s), full_spec(b3r),
                ],
                out_specs=pl.BlockSpec((B, C3p, L), lambda g: (g, 0, 0)),
            ),
            compiler_params=pltpu.CompilerParams(
                dimension_semantics=("parallel",)),
        )(x_slab, mask, w1e, b1r, w2s, b2r, w3s, b3r)

        # Drop padded channels and border/dead lanes: (Np,8,L) -> (N,3,H,W) NCHW (PyTorch parity).
        out = out[:N, :C3, :Hp * Wp].reshape(N, C3, Hp, Wp)[:, :, 1:H + 1, 1:W + 1]
        return out

    return forward


def refinement_network(input_patch, params, images_per_step=None):
    """input_patch: (N, H, W, 4) NHWC float32.  Returns (N, 3, H, W) NCHW, matching PyTorch."""
    N = input_patch.shape[0]
    if images_per_step is None:
        # Amortize per-grid-step overhead (single-TC v5e/v6e) while keeping >= 2 grid steps
        # whenever possible so both v7x TensorCores stay busy.
        images_per_step = min(8, max(1, -(-N // 2)))
    return _build_forward(int(images_per_step), _roll_is_np_style())(input_patch, params)


# ---------------------------------------------------------------- reference & params ----

def _reference(input_patch, params):
    """Pure-JAX reference (transpose-conv-as-flipped-conv identity via XLA conv)."""
    (w1, b1), (w2, b2), (w3, b3) = params

    def tconv(x_nhwc, w_t, b):
        w = jnp.transpose(w_t, (2, 3, 0, 1))[::-1, ::-1]        # (kH, kW, Cin, Cout) flipped
        y = lax.conv_general_dilated(
            x_nhwc, w, window_strides=(1, 1), padding="SAME",
            dimension_numbers=("NHWC", "HWIO", "NHWC"))
        return y + b

    x = jnp.maximum(tconv(input_patch, w1, b1), 0.0)
    x = jnp.maximum(tconv(x, w2, b2), 0.0)
    x = jax.nn.sigmoid(tconv(x, w3, b3))
    return jnp.transpose(x, (0, 3, 1, 2))


def init_params(key):
    """Deterministic synthetic parameters with PyTorch ConvTranspose2d shapes."""
    ks = jax.random.split(key, 6)
    # ConvTranspose2d weight layout: (in_channels, out_channels, kH, kW)
    w1 = jax.random.normal(ks[0], (4, 64, 3, 3), jnp.float32) * 0.1
    b1 = jax.random.normal(ks[1], (64,), jnp.float32) * 0.1
    w2 = jax.random.normal(ks[2], (64, 32, 3, 3), jnp.float32) * 0.1
    b2 = jax.random.normal(ks[3], (32,), jnp.float32) * 0.1
    w3 = jax.random.normal(ks[4], (32, 3, 3, 3), jnp.float32) * 0.1
    b3 = jax.random.normal(ks[5], (3,), jnp.float32) * 0.1
    return ((w1, b1), (w2, b2), (w3, b3))


if __name__ == "__main__":
    key = jax.random.PRNGKey(0)
    k_in, k_p = jax.random.split(key)

    N, H, W = 2, 16, 16
    input_patch = jax.random.normal(k_in, (N, H, W, 4), jnp.float32)  # NHWC (pre-permute layout)
    params = init_params(k_p)

    out = jax.block_until_ready(refinement_network(input_patch, params))
    ref = jax.block_until_ready(_reference(input_patch, params))

    assert out.shape == (N, 3, H, W), out.shape
    assert jnp.allclose(out, ref, atol=1e-5, rtol=1e-5), float(jnp.max(jnp.abs(out - ref)))

    print("KERNEL_OK")
</pallas_src>

<mosaic_0001>
module attributes {stable_mosaic.version = 11 : i64} {
  func.func @probe(%arg0: memref<8x128xf32, #tpu.memory_space<vmem>>, %arg1: memref<8x128xf32, #tpu.memory_space<vmem>>) attributes {dimension_semantics = [], scalar_prefetch = 0 : i64, scratch_operands = 0 : i64, tpu.core_type = #tpu.core_type<tc>} {
    %c0 = arith.constant 0 : index
    %c0_0 = arith.constant 0 : index
    %0 = vector.load %arg0[%c0, %c0_0] : memref<8x128xf32, #tpu.memory_space<vmem>>, vector<8x128xf32>
    %c1_i32 = arith.constant 1 : i32
    %1 = tpu.dynamic_rotate %0 by %c1_i32 dim 1 : vector<8x128xf32>, i32 -> vector<8x128xf32>
    %c0_1 = arith.constant 0 : index
    %c0_2 = arith.constant 0 : index
    %2 = vector.load %arg1[%c0_1, %c0_2] : memref<8x128xf32, #tpu.memory_space<vmem>>, vector<8x128xf32>
    tpu.vector_store %arg1[%c0_1, %c0_2], %1 {strides = array<i32>} : memref<8x128xf32, #tpu.memory_space<vmem>>, vector<8x128xf32>,
    return
  }
}

</mosaic_0001>

<llo_original>
// kernel: tpu_custom_call.1
$region0: #{tpu_custom_call.1}
  #allocation0 [shape = 'u32[]', space=smem, size = 0x4, offset = 0x4, fixed_abs, tag = 'smem constant byte address 0x4 - core index']
  #allocation1 [shape = 'u32[144,128]{1,0:T(1,128)}', space=vmem, size = 0x12000, scoped, tag = 'internal scratch']
  %s0 = inlined_call_operand.hbm [shape: f32[8,128], index: 0, kind: input, shape index: {}]
  %s1 = inlined_call_operand.hbm [shape: f32[8,128], index: 1, kind: output, shape index: {}]
  %s2 = sld [smem:[#allocation0]]
  $region18: #{tpu_custom_call.1} parent=0
    _
  %s4 = ssub.s32 1, %s2
  %s5 = scalar_select 0, %s4, %s2
  $region1: #{tpu_custom_call.1} parent=0
    #allocation2 [shape = 'u8[4096]{0}', space=vmem, size = 0x1000, scoped, tag = 'input window, operand 0, single buffered']
    #allocation3 [shape = 's32[1]{0}', space=sflag, size = 0x4, scoped, tag = 'scoped memory for tpu_custom_call.1']
    #allocation4 [shape = 's32[1]{0}', space=sflag, size = 0x4, scoped, tag = 'scoped memory for tpu_custom_call.1']
    #allocation5 [shape = 'u8[4096]{0}', space=vmem, size = 0x1000, scoped, tag = 'output window, operand 0, single buffered']
    %6 = vsyncpa [#allocation3], 0
    %7 = vsyncpa [#allocation4], 0
    // Predicated region
    $region2: #{tpu_custom_call.1} parent=1 // pred_check
      _
    $region3: #{tpu_custom_call.1} parent=1 // pred_check_branch
      %9 = sbr.rel (0) target = $region5
    $region4: #{tpu_custom_call.1} parent=1 // pred_region
      %s11 = ssub.s32 128, 128
      %12 = vsyncadd [#allocation3], %s11
      %s14 = sshll.u32 [#allocation2], 4
      %s15 = int_to_ptr.vmem [resolvable:$true] %s14
      %17 = dma.hbm_to_vmem [thread:$0]  %s0, 128, %s15, [#allocation3]
    $region5: #{tpu_custom_call.1} parent=1 // pred_fallthru
      _
    // Predicated region
    $region6: #{tpu_custom_call.1} parent=1 // pred_check
      _
    $region7: #{tpu_custom_call.1} parent=1 // pred_check_branch
      %19 = sbr.rel (0) target = $region9
    $region8: #{tpu_custom_call.1} parent=1 // pred_region
      %20 = dma.done [#allocation3], 128
    $region9: #{tpu_custom_call.1} parent=1 // pred_fallthru
      _
    %v21 = vld [vmem:[#allocation2] sm:$0xff]
    %22 = vrot.lane.b32.xlu0 %v21, 1
    %v23 = vpop.permute.xlu0 %22
    %24 = vst [vmem:[#allocation5] sm:$0xff] %v23
    // Predicated region
    $region10: #{tpu_custom_call.1} parent=1 // pred_check
      _
    $region11: #{tpu_custom_call.1} parent=1 // pred_check_branch
      %26 = sbr.rel (0) target = $region13
    $region12: #{tpu_custom_call.1} parent=1 // pred_region
      %s28 = ssub.s32 128, 128
      %29 = vsyncadd [#allocation4], %s28
      %s31 = sshll.u32 [#allocation5], 4
      %s32 = int_to_ptr.vmem [resolvable:$true] %s31
      %34 = dma.vmem_to_hbm [thread:$0]  %s32, 128, %s1, [#allocation4]
    $region13: #{tpu_custom_call.1} parent=1 // pred_fallthru
      _
    // Predicated region
    $region14: #{tpu_custom_call.1} parent=1 // pred_check
      _
    $region15: #{tpu_custom_call.1} parent=1 // pred_check_branch
      %36 = sbr.rel (0) target = $region17
    $region16: #{tpu_custom_call.1} parent=1 // pred_region
      %37 = dma.done [#allocation4], 128
    $region17: #{tpu_custom_call.1} parent=1 // pred_fallthru
      _
    %38 = vsyncpa [#allocation3], 1
    %39 = vsyncpa [#allocation4], 1

</llo_original>
